<compile_context>
chip_gen: v7x
topology: tpu7x:2x2x1
jax: 0.10.0
libtpu: 0.0.40
codegen_flags: <defaults>
</compile_context>

<pallas_src>
import numpy as np
import jax
import jax.numpy as jnp
from jax import lax
from jax.experimental import pallas as pl
from jax.experimental.pallas import tpu as pltpu


def stn3d_forward(x_bcn, params):
    """x_bcn: (B, 3, N) float32, PyTorch Conv1d layout.  Returns (B, 3, 3)."""
    B, C, N = x_bcn.shape
    assert C == 3

    (w1, b1, w2, b2, w3, b3, fw1, fb1, fw2, fb2, fw3, fb3) = params

    # ---- layout / dtype prep (glue) ----
    # points on sublanes, channels on lanes; bf16 activations for the MXU.
    x_bnc = jnp.transpose(x_bcn, (0, 2, 1)).astype(jnp.bfloat16)      # (B, N, 3)

    w1b, w2b, w3b = (w.astype(jnp.bfloat16) for w in (w1, w2, w3))
    fw1b, fw2b = fw1.astype(jnp.bfloat16), fw2.astype(jnp.bfloat16)
    # pad fc3 to 128 output lanes -> lane-dense kernel output.
    fw3p = jnp.pad(fw3, ((0, 0), (0, 128 - fw3.shape[1]))).astype(jnp.bfloat16)
    fb3p = jnp.pad(fb3, ((0, 0), (0, 128 - fb3.shape[1]))).astype(jnp.float32)

    # point-axis tile: whole N if small, else 512 (multiple of 128 -> legal
    # block even when N % TN != 0; remainder rows are masked in-kernel).
    TN = N if N <= 512 else 512
    n_tiles = pl.cdiv(N, TN)

    # ---------------- stage 1: conv stack + global max ----------------
    def feat_kernel(x_ref, w1_ref, b1_ref, w2_ref, b2_ref, w3_ref, b3_ref,
                    g_ref):
        nk = pl.program_id(1)
        x_t = x_ref[0]                                                # (TN, 3) bf16

        # conv1 (3->64) + folded bn1 + relu
        h = jnp.dot(x_t, w1_ref[...], preferred_element_type=jnp.float32)
        h = jnp.maximum(h + b1_ref[...], 0.0).astype(jnp.bfloat16)    # (TN, 64)
        # conv2 (64->128) + folded bn2 + relu
        h = jnp.dot(h, w2_ref[...], preferred_element_type=jnp.float32)
        h = jnp.maximum(h + b2_ref[...], 0.0).astype(jnp.bfloat16)    # (TN, 128)
        # conv3 (128->1024) + folded bn3 + relu
        h = jnp.dot(h, w3_ref[...], preferred_element_type=jnp.float32)
        h = jnp.maximum(h + b3_ref[...], 0.0)                         # (TN, 1024) f32

        if N % TN != 0:
            # zero out rows past N; post-ReLU values are >= 0, so zeros never
            # exceed the true max.
            row = lax.broadcasted_iota(jnp.int32, (TN, 1), 0)
            valid = (nk * TN + row) < N
            h = jnp.where(valid, h, 0.0)

        tile_max = jnp.max(h, axis=0, keepdims=True)                  # (1, 1024)

        @pl.when(nk == 0)
        def _():
            g_ref[0] = tile_max

        @pl.when(nk != 0)
        def _():
            g_ref[0] = jnp.maximum(g_ref[0], tile_max)

    full2 = lambda arr: pl.BlockSpec(arr.shape, lambda b, nk: (0,) * arr.ndim)

    g = pl.pallas_call(
        feat_kernel,
        out_shape=jax.ShapeDtypeStruct((B, 1, 1024), jnp.float32),
        grid=(B, n_tiles),
        in_specs=[
            pl.BlockSpec((1, TN, 3), lambda b, nk: (b, nk, 0)),
            full2(w1b), full2(b1),
            full2(w2b), full2(b2),
            full2(w3b), full2(b3),
        ],
        out_specs=pl.BlockSpec((1, 1, 1024), lambda b, nk: (b, 0, 0)),
        compiler_params=pltpu.CompilerParams(
            dimension_semantics=("parallel", "arbitrary")),
    )(x_bnc, w1b, b1, w2b, b2, w3b, b3)

    g = g.reshape(B, 1024)                                            # free reshape

    # ---------------- stage 2: fc stack over the whole batch ----------------
    def fc_kernel(g_ref, fw1_ref, fb1_ref, fw2_ref, fb2_ref, fw3_ref, fb3_ref,
                  o_ref):
        gb = g_ref[...].astype(jnp.bfloat16)                          # (B, 1024)
        # fc1 (1024->512) + folded bn4 + relu
        f = jnp.dot(gb, fw1_ref[...], preferred_element_type=jnp.float32) + fb1_ref[...]
        f = jnp.maximum(f, 0.0).astype(jnp.bfloat16)                  # (B, 512)
        # fc2 (512->256) + folded bn5 + relu
        f = jnp.dot(f, fw2_ref[...], preferred_element_type=jnp.float32) + fb2_ref[...]
        f = jnp.maximum(f, 0.0).astype(jnp.bfloat16)                  # (B, 256)
        # fc3 (256->9, zero-padded to 128 lanes), no bn / relu
        f = jnp.dot(f, fw3_ref[...], preferred_element_type=jnp.float32) + fb3_ref[...]  # (B, 128)

        # add flattened 3x3 identity on lanes 0, 4, 8
        col = lax.broadcasted_iota(jnp.int32, f.shape, 1)
        iden = jnp.where(jnp.logical_and(col < 9, col % 4 == 0), 1.0, 0.0)
        o_ref[...] = f + iden.astype(jnp.float32)

    full1 = lambda arr: pl.BlockSpec(arr.shape, lambda i: (0,) * arr.ndim)

    out128 = pl.pallas_call(
        fc_kernel,
        out_shape=jax.ShapeDtypeStruct((B, 128), jnp.float32),
        grid=(1,),
        in_specs=[
            pl.BlockSpec((B, 1024), lambda i: (0, 0)),
            full1(fw1b), full1(fb1),
            full1(fw2b), full1(fb2),
            full1(fw3p), full1(fb3p),
        ],
        out_specs=pl.BlockSpec((B, 128), lambda i: (0, 0)),
        compiler_params=pltpu.CompilerParams(
            dimension_semantics=("arbitrary",)),
    )(g, fw1b, fb1, fw2b, fb2, fw3p, fb3p)

    return out128[:, :9].reshape(B, 3, 3)


# ---------------- parameter construction (deterministic, glue) ----------------

def _fold_bn(w, b, gamma, beta, mean, var, eps=1e-5):
    """Fold inference-mode BatchNorm into a (Cin, Cout) weight + (1, Cout) bias."""
    scale = gamma / jnp.sqrt(var + eps)                               # (Cout,)
    w_eff = w * scale[None, :]
    b_eff = (b - mean) * scale + beta
    return w_eff.astype(jnp.float32), b_eff[None, :].astype(jnp.float32)


def make_params(key):
    dims = [(3, 64), (64, 128), (128, 1024), (1024, 512), (512, 256), (256, 9)]
    keys = jax.random.split(key, 6 * 2 + 5 * 4)
    ki = iter(keys)

    raw = []
    for cin, cout in dims:
        w = 0.1 * jax.random.normal(next(ki), (cin, cout), jnp.float32)
        b = 0.05 * jax.random.normal(next(ki), (cout,), jnp.float32)
        raw.append((w, b))

    bns = []
    for (_, cout) in dims[:5]:
        gamma = 1.0 + 0.1 * jax.random.normal(next(ki), (cout,), jnp.float32)
        beta = 0.1 * jax.random.normal(next(ki), (cout,), jnp.float32)
        mean = 0.1 * jax.random.normal(next(ki), (cout,), jnp.float32)
        var = 1.0 + 0.1 * jnp.abs(jax.random.normal(next(ki), (cout,), jnp.float32))
        bns.append((gamma, beta, mean, var))

    folded = []
    for i in range(5):
        w, b = raw[i]
        folded.extend(_fold_bn(w, b, *bns[i]))
    # fc3: no batchnorm
    w3, b3 = raw[5]
    folded.extend([w3.astype(jnp.float32), b3[None, :].astype(jnp.float32)])
    return tuple(folded)


def reference_forward(x_bcn, params):
    (w1, b1, w2, b2, w3, b3, fw1, fb1, fw2, fb2, fw3, fb3) = params
    x = jnp.transpose(x_bcn, (0, 2, 1)).astype(jnp.float32)           # (B, N, 3)
    h = jax.nn.relu(x @ w1 + b1)
    h = jax.nn.relu(h @ w2 + b2)
    h = jax.nn.relu(h @ w3 + b3)
    g = jnp.max(h, axis=1)                                            # (B, 1024)
    f = jax.nn.relu(g @ fw1 + fb1[0])
    f = jax.nn.relu(f @ fw2 + fb2[0])
    f = f @ fw3 + fb3[0]
    iden = jnp.array([1, 0, 0, 0, 1, 0, 0, 0, 1], jnp.float32)
    return (f + iden).reshape(-1, 3, 3)


if __name__ == "__main__":
    key = jax.random.PRNGKey(0)
    k_param, k_x = jax.random.split(key)

    B, N = 2, 16
    x = jax.random.normal(k_x, (B, 3, N), jnp.float32)                # PyTorch layout (B, C=3, N)
    params = make_params(k_param)

    out = stn3d_forward(x, params)
    out = jax.block_until_ready(out)

    ref = reference_forward(x, params)                                # f32 reference
    assert out.shape == (B, 3, 3)
    # kernel runs bf16 MXU matmuls with f32 accumulation -> slightly relaxed tol
    np.testing.assert_allclose(np.asarray(out), np.asarray(ref), rtol=2e-2, atol=2e-2)

    print("KERNEL_OK")
</pallas_src>

<mosaic_0001>
module attributes {stable_mosaic.version = 11 : i64} {
  func.func @feat_kernel(%arg0: i32, %arg1: i32, %arg2: memref<1x16x3xbf16, #tpu.memory_space<vmem>>, %arg3: memref<3x64xbf16, #tpu.memory_space<vmem>>, %arg4: memref<1x64xf32, #tpu.memory_space<vmem>>, %arg5: memref<64x128xbf16, #tpu.memory_space<vmem>>, %arg6: memref<1x128xf32, #tpu.memory_space<vmem>>, %arg7: memref<128x1024xbf16, #tpu.memory_space<vmem>>, %arg8: memref<1x1024xf32, #tpu.memory_space<vmem>>, %arg9: memref<1x1x1024xf32, #tpu.memory_space<vmem>>) attributes {dimension_semantics = [#tpu.dimension_semantics<parallel>, #tpu.dimension_semantics<arbitrary>], iteration_bounds = array<i64: 2, 1>, scalar_prefetch = 0 : i64, scratch_operands = 0 : i64, tpu.core_type = #tpu.core_type<tc>, window_params = [{transform_indices = @transform_0, window_bounds = array<i64: 1, 16, 3>}, {pipeline_mode = #tpu.pipeline_mode<synchronous>, transform_indices = @transform_1, window_bounds = array<i64: 3, 64>}, {pipeline_mode = #tpu.pipeline_mode<synchronous>, transform_indices = @transform_2, window_bounds = array<i64: 1, 64>}, {pipeline_mode = #tpu.pipeline_mode<synchronous>, transform_indices = @transform_3, window_bounds = array<i64: 64, 128>}, {pipeline_mode = #tpu.pipeline_mode<synchronous>, transform_indices = @transform_4, window_bounds = array<i64: 1, 128>}, {pipeline_mode = #tpu.pipeline_mode<synchronous>, transform_indices = @transform_5, window_bounds = array<i64: 128, 1024>}, {pipeline_mode = #tpu.pipeline_mode<synchronous>, transform_indices = @transform_6, window_bounds = array<i64: 1, 1024>}, {transform_indices = @transform_7, window_bounds = array<i64: 1, 1, 1024>}]} {
    %c0 = arith.constant 0 : index
    %c0_0 = arith.constant 0 : index
    %c0_1 = arith.constant 0 : index
    %0 = vector.load %arg2[%c0, %c0_0, %c0_1] : memref<1x16x3xbf16, #tpu.memory_space<vmem>>, vector<1x16x3xbf16>
    %1 = vector.shape_cast %0 : vector<1x16x3xbf16> to vector<16x3xbf16>
    %c0_2 = arith.constant 0 : index
    %c0_3 = arith.constant 0 : index
    %2 = vector.load %arg3[%c0_2, %c0_3] : memref<3x64xbf16, #tpu.memory_space<vmem>>, vector<3x64xbf16>
    %cst = arith.constant dense<0.000000e+00> : vector<16x64xf32>
    %3 = tpu.matmul %1, %2, %cst {dimension_numbers = #tpu.dot_dimension_numbers<[1], [0], [0], [1], [0, 0, 1, 1], [], []>} : vector<16x3xbf16>, vector<3x64xbf16>, vector<16x64xf32> -> vector<16x64xf32>
    %c0_4 = arith.constant 0 : index
    %c0_5 = arith.constant 0 : index
    %4 = vector.load %arg4[%c0_4, %c0_5] : memref<1x64xf32, #tpu.memory_space<vmem>>, vector<1x64xf32>
    %5 = vector.broadcast %4 : vector<1x64xf32> to vector<16x64xf32>
    %6 = arith.addf %3, %5 : vector<16x64xf32>
    %cst_6 = arith.constant 0.000000e+00 : f32
    %7 = vector.broadcast %cst_6 : f32 to vector<16x64xf32>
    %8 = arith.maximumf %6, %7 : vector<16x64xf32>
    %9 = arith.truncf %8 : vector<16x64xf32> to vector<16x64xbf16>
    %c0_7 = arith.constant 0 : index
    %c0_8 = arith.constant 0 : index
    %10 = vector.load %arg5[%c0_7, %c0_8] : memref<64x128xbf16, #tpu.memory_space<vmem>>, vector<64x128xbf16>
    %cst_9 = arith.constant dense<0.000000e+00> : vector<16x128xf32>
    %11 = tpu.matmul %9, %10, %cst_9 {dimension_numbers = #tpu.dot_dimension_numbers<[1], [0], [0], [1], [0, 0, 1, 1], [], []>} : vector<16x64xbf16>, vector<64x128xbf16>, vector<16x128xf32> -> vector<16x128xf32>
    %c0_10 = arith.constant 0 : index
    %c0_11 = arith.constant 0 : index
    %12 = vector.load %arg6[%c0_10, %c0_11] : memref<1x128xf32, #tpu.memory_space<vmem>>, vector<1x128xf32>
    %13 = vector.broadcast %12 : vector<1x128xf32> to vector<16x128xf32>
    %14 = arith.addf %11, %13 : vector<16x128xf32>
    %cst_12 = arith.constant 0.000000e+00 : f32
    %15 = vector.broadcast %cst_12 : f32 to vector<16x128xf32>
    %16 = arith.maximumf %14, %15 : vector<16x128xf32>
    %17 = arith.truncf %16 : vector<16x128xf32> to vector<16x128xbf16>
    %c0_13 = arith.constant 0 : index
    %c0_14 = arith.constant 0 : index
    %18 = vector.load %arg7[%c0_13, %c0_14] : memref<128x1024xbf16, #tpu.memory_space<vmem>>, vector<128x1024xbf16>
    %cst_15 = arith.constant dense<0.000000e+00> : vector<16x1024xf32>
    %19 = tpu.matmul %17, %18, %cst_15 {dimension_numbers = #tpu.dot_dimension_numbers<[1], [0], [0], [1], [0, 0, 1, 1], [], []>} : vector<16x128xbf16>, vector<128x1024xbf16>, vector<16x1024xf32> -> vector<16x1024xf32>
    %c0_16 = arith.constant 0 : index
    %c0_17 = arith.constant 0 : index
    %20 = vector.load %arg8[%c0_16, %c0_17] : memref<1x1024xf32, #tpu.memory_space<vmem>>, vector<1x1024xf32>
    %21 = vector.broadcast %20 : vector<1x1024xf32> to vector<16x1024xf32>
    %22 = arith.addf %19, %21 : vector<16x1024xf32>
    %cst_18 = arith.constant 0.000000e+00 : f32
    %23 = vector.broadcast %cst_18 : f32 to vector<16x1024xf32>
    %24 = arith.maximumf %22, %23 : vector<16x1024xf32>
    %cst_19 = arith.constant dense<0xFF800000> : vector<1024xf32>
    %25 = vector.multi_reduction <maximumf>, %24, %cst_19 [0] : vector<16x1024xf32> to vector<1024xf32>
    %26 = vector.shape_cast %25 : vector<1024xf32> to vector<1x1024xf32>
    %c0_i32 = arith.constant 0 : i32
    %27 = arith.cmpi eq, %arg1, %c0_i32 : i32
    %28 = arith.extui %27 : i1 to i32
    %c0_i32_20 = arith.constant 0 : i32
    %29 = arith.cmpi ne, %28, %c0_i32_20 : i32
    scf.if %29 {
      %c0_23 = arith.constant 0 : index
      %c0_24 = arith.constant 0 : index
      %c0_25 = arith.constant 0 : index
      %33 = vector.load %arg9[%c0_23, %c0_24, %c0_25] : memref<1x1x1024xf32, #tpu.memory_space<vmem>>, vector<1x1x1024xf32>
      %34 = vector.shape_cast %33 : vector<1x1x1024xf32> to vector<1x1024xf32>
      %35 = vector.shape_cast %26 : vector<1x1024xf32> to vector<1x1x1024xf32>
      tpu.vector_store %arg9[%c0_23, %c0_24, %c0_25], %35 {strides = array<i32>} : memref<1x1x1024xf32, #tpu.memory_space<vmem>>, vector<1x1x1024xf32>,
    } else {
    }
    %c0_i32_21 = arith.constant 0 : i32
    %30 = arith.cmpi ne, %arg1, %c0_i32_21 : i32
    %31 = arith.extui %30 : i1 to i32
    %c0_i32_22 = arith.constant 0 : i32
    %32 = arith.cmpi ne, %31, %c0_i32_22 : i32
    scf.if %32 {
      %c0_23 = arith.constant 0 : index
      %c0_24 = arith.constant 0 : index
      %c0_25 = arith.constant 0 : index
      %33 = vector.load %arg9[%c0_23, %c0_24, %c0_25] : memref<1x1x1024xf32, #tpu.memory_space<vmem>>, vector<1x1x1024xf32>
      %34 = vector.shape_cast %33 : vector<1x1x1024xf32> to vector<1x1024xf32>
      %35 = arith.maximumf %34, %26 : vector<1x1024xf32>
      %c0_26 = arith.constant 0 : index
      %c0_27 = arith.constant 0 : index
      %c0_28 = arith.constant 0 : index
      %36 = vector.load %arg9[%c0_26, %c0_27, %c0_28] : memref<1x1x1024xf32, #tpu.memory_space<vmem>>, vector<1x1x1024xf32>
      %37 = vector.shape_cast %36 : vector<1x1x1024xf32> to vector<1x1024xf32>
      %38 = vector.shape_cast %35 : vector<1x1024xf32> to vector<1x1x1024xf32>
      tpu.vector_store %arg9[%c0_26, %c0_27, %c0_28], %38 {strides = array<i32>} : memref<1x1x1024xf32, #tpu.memory_space<vmem>>, vector<1x1x1024xf32>,
    } else {
    }
    return
  }
  func.func @transform_0(%arg0: i32, %arg1: i32) -> (i32, i32, i32) {
    %c0_i32 = arith.constant 0 : i32
    %c0_i32_0 = arith.constant 0 : i32
    return %arg0, %arg1, %c0_i32 : i32, i32, i32
  }
  func.func @transform_1(%arg0: i32, %arg1: i32) -> (i32, i32) {
    %c0_i32 = arith.constant 0 : i32
    %c0_i32_0 = arith.constant 0 : i32
    %c0_i32_1 = arith.constant 0 : i32
    return %c0_i32, %c0_i32_0 : i32, i32
  }
  func.func @transform_2(%arg0: i32, %arg1: i32) -> (i32, i32) {
    %c0_i32 = arith.constant 0 : i32
    %c0_i32_0 = arith.constant 0 : i32
    %c0_i32_1 = arith.constant 0 : i32
    return %c0_i32, %c0_i32_0 : i32, i32
  }
  func.func @transform_3(%arg0: i32, %arg1: i32) -> (i32, i32) {
    %c0_i32 = arith.constant 0 : i32
    %c0_i32_0 = arith.constant 0 : i32
    %c0_i32_1 = arith.constant 0 : i32
    return %c0_i32, %c0_i32_0 : i32, i32
  }
  func.func @transform_4(%arg0: i32, %arg1: i32) -> (i32, i32) {
    %c0_i32 = arith.constant 0 : i32
    %c0_i32_0 = arith.constant 0 : i32
    %c0_i32_1 = arith.constant 0 : i32
    return %c0_i32, %c0_i32_0 : i32, i32
  }
  func.func @transform_5(%arg0: i32, %arg1: i32) -> (i32, i32) {
    %c0_i32 = arith.constant 0 : i32
    %c0_i32_0 = arith.constant 0 : i32
    %c0_i32_1 = arith.constant 0 : i32
    return %c0_i32, %c0_i32_0 : i32, i32
  }
  func.func @transform_6(%arg0: i32, %arg1: i32) -> (i32, i32) {
    %c0_i32 = arith.constant 0 : i32
    %c0_i32_0 = arith.constant 0 : i32
    %c0_i32_1 = arith.constant 0 : i32
    return %c0_i32, %c0_i32_0 : i32, i32
  }
  func.func @transform_7(%arg0: i32, %arg1: i32) -> (i32, i32, i32) {
    %c0_i32 = arith.constant 0 : i32
    %c0_i32_0 = arith.constant 0 : i32
    %c0_i32_1 = arith.constant 0 : i32
    return %arg0, %c0_i32, %c0_i32_0 : i32, i32, i32
  }
}

</mosaic_0001>

<llo_original>
// kernel: tpu_custom_call.1
$region0: #{tpu_custom_call.1}
  #allocation0 [shape = 'u32[]', space=smem, size = 0x4, offset = 0x4, fixed_abs, tag = 'smem constant byte address 0x4 - core index']
  #allocation1 [shape = 'u32[144,128]{1,0:T(1,128)}', space=vmem, size = 0x12000, scoped, tag = 'internal scratch']
  %s0 = inlined_call_operand.vmem [shape: bf16[2,16,3], index: 0, kind: input, shape index: {}]
  %s1 = inlined_call_operand.vmem [shape: bf16[3,64], index: 1, kind: input, shape index: {}]
  %s2 = inlined_call_operand.vmem [shape: f32[1,64], index: 2, kind: input, shape index: {}]
  %s3 = inlined_call_operand.hbm [shape: bf16[64,128], index: 3, kind: input, shape index: {}]
  %s4 = inlined_call_operand.vmem [shape: f32[1,128], index: 4, kind: input, shape index: {}]
  %s5 = inlined_call_operand.hbm [shape: bf16[128,1024], index: 5, kind: input, shape index: {}]
  %s6 = inlined_call_operand.vmem [shape: f32[1,1024], index: 6, kind: input, shape index: {}]
  %s7 = inlined_call_operand.hbm [shape: f32[2,1,1024], index: 7, kind: output, shape index: {}]
  %s8 = sld [smem:[#allocation0]]
  $region77: #{tpu_custom_call.1} parent=0
    _
  %s10 = ssub.s32 1, %s8
  %s11 = scalar_select 0, %s10, %s8
  $region1: #{tpu_custom_call.1} parent=0
    #allocation2 [shape = 'u8[16384]{0}', space=vmem, size = 0x4000, scoped, tag = 'input window, operand 3, single buffered']
    #allocation3 [shape = 's32[2]{0}', space=sflag, size = 0x8, scoped, tag = 'scoped memory for tpu_custom_call.1']
    #allocation4 [shape = 's32[2]{0}', space=sflag, size = 0x8, scoped, tag = 'scoped memory for tpu_custom_call.1']
    #allocation5 [shape = 'u8[262144]{0}', space=vmem, size = 0x40000, scoped, tag = 'input window, operand 5, single buffered']
    #allocation6 [shape = 's32[1]{0}', space=sflag, size = 0x4, scoped, tag = 'scoped memory for tpu_custom_call.1']
    #allocation7 [shape = 'u8[8192]{0}', space=vmem, size = 0x2000, scoped, tag = 'output window, operand 0']
    %12 = vsyncpa [#allocation3], 0
    %13 = vsyncpa [#allocation6], 0
    %14 = vsyncpa [#allocation4], 0
    %s15 = scalar_lea.sflag [#allocation4], 1
    %16 = vsyncpa %s15, 0
    loop: start=0, step=1, limit=4
    $region2: #{tpu_custom_call.1} parent=1 // loop_pre_header
      _
    $region3: #{tpu_custom_call.1} parent=1 // loop_header
      %s18 = sphi 0, %s22
      %p19 = scmp.ge.s32.totalorder %s18, 4
      %s25 = sphi 0, %s37
      %s26 = sphi 0, %s33
      %s27 = sphi 0, %s25
      %s28 = sphi 0, %s26
      %s29 = sphi 0, %s27
      %s30 = sphi 0, %s28
      %s42 = sphi 0, %s44
      %s45 = sphi 0, %s42
      %s46 = sphi 0, %s45
      %s62 = sphi 0, %s46
      %s66 = sphi 0, %s66
      %s68 = sphi 0, %s66
      %s69 = sphi 0, %s68
      %s83 = sphi 0, %s69
      %s87 = sphi 0, %s87
      %s89 = sphi 0, %s87
      %s90 = sphi 0, %s89
      %s104 = sphi 0, %s90
      %s108 = sphi 0, %s108
      %s110 = sphi 0, %s108
      %s111 = sphi 0, %s110
      %s125 = sphi 0, %s111
      %s129 = sphi 0, %s129
      %s131 = sphi 0, %s129
      %s132 = sphi 0, %s131
      %s146 = sphi 0, %s132
      %s150 = sphi 0, %s150
      %s152 = sphi 0, %s150
      %s153 = sphi 0, %s152
      %s167 = sphi 0, %s153
      %s171 = sphi 0, %s171
      %s173 = sphi 0, %s171
      %s174 = sphi 0, %s173
      %s188 = sphi 0, %s174
      %s194 = sphi 0, %s196
      %s197 = sphi 0, %s194
      %s198 = sphi 0, %s197
      %s214 = sphi 0, %s198
    $region4: #{tpu_custom_call.1} parent=1 // loop_header_branch
      %21 = sbr.rel (%p19) target = $region8
    $region5: #{tpu_custom_call.1} parent=1 // loop_body
      %s23 = ssub.s32 %s18, 1
      %s24 = ssub.s32 %s18, 2
      %s31 = sadd.s32 1, %s26
      %p32 = scmp.ge.s32.totalorder %s31, 1
      %s33 = scalar_select %p32, 0, %s31
      %s34 = sadd.s32 1, %s25
      %s35 = scalar_select %p32, %s34, %s25
      %p36 = scmp.ge.s32.totalorder %s35, 2
      %s37 = scalar_select %p36, 0, %s35
      %s38 = ssub.s32 %s25, %s37
      %s39 = ssub.s32 %s26, %s33
      %s40 = sor.u32 %s38, %s39
      %p41 = scmp.eq.s32.totalorder %s40, 0
      %s43 = sadd.s32 %s42, 1
      %s44 = scalar_select %p41, %s42, %s43
      %p47 = pneg %p41
      %p48 = scmp.eq.s32.totalorder %s18, 1
      %p49 = por %p47, %p48
      %p50 = scmp.ne.s32.totalorder %s42, %s45
      %p51 = scmp.eq.s32.totalorder %s18, 0
      %p52 = por %p50, %p51
      %p53 = scmp.ne.s32.totalorder %s42, %s45
      %p54 = scmp.eq.s32.totalorder %s23, 1
      %p55 = por %p53, %p54
      %p56 = scmp.ne.s32.totalorder %s45, %s46
      %p57 = scmp.eq.s32.totalorder %s23, 0
      %p58 = por %p56, %p57
      %p59 = scmp.ne.s32.totalorder %s45, %s46
      %p60 = scmp.eq.s32.totalorder %s24, 1
      %p61 = por %p59, %p60
      %p63 = scmp.ne.s32.totalorder %s46, %s62
      %p64 = scmp.eq.s32.totalorder %s24, 0
      %p65 = por %p63, %p64
      %s67 = sadd.s32 %s66, 1
      %p70 = scmp.eq.s32.totalorder %s18, 1
      %p71 = scmp.ne.s32.totalorder %s66, %s68
      %p72 = scmp.eq.s32.totalorder %s18, 0
      %p73 = por %p71, %p72
      %p74 = scmp.ne.s32.totalorder %s66, %s68
      %p75 = scmp.eq.s32.totalorder %s23, 1
      %p76 = por %p74, %p75
      %p77 = scmp.ne.s32.totalorder %s68, %s69
      %p78 = scmp.eq.s32.totalorder %s23, 0
      %p79 = por %p77, %p78
      %p80 = scmp.ne.s32.totalorder %s68, %s69
      %p81 = scmp.eq.s32.totalorder %s24, 1
      %p82 = por %p80, %p81
      %p84 = scmp.ne.s32.totalorder %s69, %s83
      %p85 = scmp.eq.s32.totalorder %s24, 0
      %p86 = por %p84, %p85
      %s88 = sadd.s32 %s87, 1
      %p91 = scmp.eq.s32.totalorder %s18, 1
      %p92 = scmp.ne.s32.totalorder %s87, %s89
      %p93 = scmp.eq.s32.totalorder %s18, 0
      %p94 = por %p92, %p93
      %p95 = scmp.ne.s32.totalorder %s87, %s89
      %p96 = scmp.eq.s32.totalorder %s23, 1
      %p97 = por %p95, %p96
      %p98 = scmp.ne.s32.totalorder %s89, %s90
      %p99 = scmp.eq.s32.totalorder %s23, 0
      %p100 = por %p98, %p99
      %p101 = scmp.ne.s32.totalorder %s89, %s90
      %p102 = scmp.eq.s32.totalorder %s24, 1
      %p103 = por %p101, %p102
      %p105 = scmp.ne.s32.totalorder %s90, %s104
      %p106 = scmp.eq.s32.totalorder %s24, 0
      %p107 = por %p105, %p106
      %s109 = sadd.s32 %s108, 1
      %p112 = scmp.eq.s32.totalorder %s18, 1
      %p113 = scmp.ne.s32.totalorder %s108, %s110
      %p114 = scmp.eq.s32.totalorder %s18, 0
      %p115 = por %p113, %p114
      %p116 = scmp.ne.s32.totalorder %s108, %s110
      %p117 = scmp.eq.s32.totalorder %s23, 1
      %p118 = por %p116, %p117
      %p119 = scmp.ne.s32.totalorder %s110, %s111
      %p120 = scmp.eq.s32.totalorder %s23, 0
      %p121 = por %p119, %p120
      %p122 = scmp.ne.s32.totalorder %s110, %s111
      %p123 = scmp.eq.s32.totalorder %s24, 1
      %p124 = por %p122, %p123
      %p126 = scmp.ne.s32.totalorder %s111, %s125
      %p127 = scmp.eq.s32.totalorder %s24, 0
      %p128 = por %p126, %p127
      %s130 = sadd.s32 %s129, 1
      %p133 = scmp.eq.s32.totalorder %s18, 1
      %p134 = scmp.ne.s32.totalorder %s129, %s131
      %p135 = scmp.eq.s32.totalorder %s18, 0
      %p136 = por %p134, %p135
      %p137 = scmp.ne.s32.totalorder %s129, %s131
      %p138 = scmp.eq.s32.totalorder %s23, 1
      %p139 = por %p137, %p138
      %p140 = scmp.ne.s32.totalorder %s131, %s132
      %p141 = scmp.eq.s32.totalorder %s23, 0
      %p142 = por %p140, %p141
      %p143 = scmp.ne.s32.totalorder %s131, %s132
      %p144 = scmp.eq.s32.totalorder %s24, 1
      %p145 = por %p143, %p144
      %p147 = scmp.ne.s32.totalorder %s132, %s146
      %p148 = scmp.eq.s32.totalorder %s24, 0
      %p149 = por %p147, %p148
      %s151 = sadd.s32 %s150, 1
      %p154 = scmp.eq.s32.totalorder %s18, 1
      %p155 = scmp.ne.s32.totalorder %s150, %s152
      %p156 = scmp.eq.s32.totalorder %s18, 0
      %p157 = por %p155, %p156
      %p158 = scmp.ne.s32.totalorder %s150, %s152
      %p159 = scmp.eq.s32.totalorder %s23, 1
      %p160 = por %p158, %p159
      %p161 = scmp.ne.s32.totalorder %s152, %s153
      %p162 = scmp.eq.s32.totalorder %s23, 0
      %p163 = por %p161, %p162
      %p164 = scmp.ne.s32.totalorder %s152, %s153
      %p165 = scmp.eq.s32.totalorder %s24, 1
      %p166 = por %p164, %p165
      %p168 = scmp.ne.s32.totalorder %s153, %s167
      %p169 = scmp.eq.s32.totalorder %s24, 0
      %p170 = por %p168, %p169
      %s172 = sadd.s32 %s171, 1
      %p175 = scmp.eq.s32.totalorder %s18, 1
      %p176 = scmp.ne.s32.totalorder %s171, %s173
      %p177 = scmp.eq.s32.totalorder %s18, 0
      %p178 = por %p176, %p177
      %p179 = scmp.ne.s32.totalorder %s171, %s173
      %p180 = scmp.eq.s32.totalorder %s23, 1
      %p181 = por %p179, %p180
      %p182 = scmp.ne.s32.totalorder %s173, %s174
      %p183 = scmp.eq.s32.totalorder %s23, 0
      %p184 = por %p182, %p183
      %p185 = scmp.ne.s32.totalorder %s173, %s174
      %p186 = scmp.eq.s32.totalorder %s24, 1
      %p187 = por %p185, %p186
      %p189 = scmp.ne.s32.totalorder %s174, %s188
      %p190 = scmp.eq.s32.totalorder %s24, 0
      %p191 = por %p189, %p190
      %s192 = ssub.s32 %s25, %s37
      %p193 = scmp.eq.s32.totalorder %s192, 0
      %s195 = sadd.s32 %s194, 1
      %s196 = scalar_select %p193, %s194, %s195
      %p199 = pneg %p193
      %p200 = scmp.eq.s32.totalorder %s18, 1
      %p201 = por %p199, %p200
      %p202 = scmp.ne.s32.totalorder %s194, %s197
      %p203 = scmp.eq.s32.totalorder %s18, 0
      %p204 = por %p202, %p203
      %p205 = scmp.ne.s32.totalorder %s194, %s197
      %p206 = scmp.eq.s32.totalorder %s23, 1
      %p207 = por %p205, %p206
      %p208 = scmp.ne.s32.totalorder %s197, %s198
      %p209 = scmp.eq.s32.totalorder %s23, 0
      %p210 = por %p208, %p209
      %p211 = scmp.ne.s32.totalorder %s197, %s198
      %p212 = scmp.eq.s32.totalorder %s24, 1
      %p213 = por %p211, %p212
      %p215 = scmp.ne.s32.totalorder %s198, %s214
      %p216 = scmp.eq.s32.totalorder %s24, 0
      %p217 = por %p215, %p216
      %p218 = scmp.le.s32.totalorder 1, %s18
      %p219 = scmp.lt.s32.totalorder %s18, 3
      %p220 = pnand %p218, %p219
      %p221 = pneg %p220
      // Predicated region
      $region9: #{tpu_custom_call.1} parent=5 // pred_check
        _
      $region10: #{tpu_custom_call.1} parent=5 // pred_check_branch
        %223 = sbr.rel (%p220) target = $region12
      $region11: #{tpu_custom_call.1} parent=5 // pred_region
        %s224 = ssub.s32 %s18, 1
        // Predicated region
        $region13: #{tpu_custom_call.1} parent=11 // pred_check
          %p225 = pneg %p79
        $region14: #{tpu_custom_call.1} parent=11 // pred_check_branch
          %227 = sbr.rel (%p225) target = $region16
        $region15: #{tpu_custom_call.1} parent=11 // pred_region
          _
        $region16: #{tpu_custom_call.1} parent=11 // pred_fallthru
          _
        // Predicated region
        $region17: #{tpu_custom_call.1} parent=11 // pred_check
          %p228 = pneg %p100
        $region18: #{tpu_custom_call.1} parent=11 // pred_check_branch
          %230 = sbr.rel (%p228) target = $region20
        $region19: #{tpu_custom_call.1} parent=11 // pred_region
          _
        $region20: #{tpu_custom_call.1} parent=11 // pred_fallthru
          _
        // Predicated region
        $region21: #{tpu_custom_call.1} parent=11 // pred_check
          %p231 = pneg %p121
        $region22: #{tpu_custom_call.1} parent=11 // pred_check_branch
          %233 = sbr.rel (%p231) target = $region24
        $region23: #{tpu_custom_call.1} parent=11 // pred_region
          %s235 = ssub.s32 512, 512
          %236 = vsyncadd [#allocation3], %s235
          %s237 = sshll.u32 [#allocation2], 4
          %s238 = int_to_ptr.vmem [resolvable:$true] %s237
          %243 = dma.hbm_to_vmem [thread:$0]  %s3, 512, %s238, [#allocation3], 64, 64, 4
        $region24: #{tpu_custom_call.1} parent=11 // pred_fallthru
          _
        // Predicated region
        $region25: #{tpu_custom_call.1} parent=11 // pred_check
          %p244 = pneg %p142
        $region26: #{tpu_custom_call.1} parent=11 // pred_check_branch
          %246 = sbr.rel (%p244) target = $region28
        $region27: #{tpu_custom_call.1} parent=11 // pred_region
          _
        $region28: #{tpu_custom_call.1} parent=11 // pred_fallthru
          _
        // Predicated region
        $region29: #{tpu_custom_call.1} parent=11 // pred_check
          %p247 = pneg %p163
        $region30: #{tpu_custom_call.1} parent=11 // pred_check_branch
          %249 = sbr.rel (%p247) target = $region32
        $region31: #{tpu_custom_call.1} parent=11 // pred_region
          %s251 = ssub.s32 8192, 8192
          %252 = vsyncadd [#allocation6], %s251
          %s253 = sshll.u32 [#allocation5], 4
          %s254 = int_to_ptr.vmem [resolvable:$true] %s253
          %259 = dma.hbm_to_vmem [thread:$0]  %s5, 8192, %s254, [#allocation6], 512, 512, 32
        $region32: #{tpu_custom_call.1} parent=11 // pred_fallthru
          _
        // Predicated region
        $region33: #{tpu_custom_call.1} parent=11 // pred_check
          %p260 = pneg %p184
        $region34: #{tpu_custom_call.1} parent=11 // pred_check_branch
          %262 = sbr.rel (%p260) target = $region36
        $region35: #{tpu_custom_call.1} parent=11 // pred_region
          _
        $region36: #{tpu_custom_call.1} parent=11 // pred_fallthru
          _
      $region12: #{tpu_custom_call.1} parent=5 // pred_fallthru
        _
      %p263 = scmp.lt.s32.totalorder %s18, 2
      // Predicated region
      $region37: #{tpu_custom_call.1} parent=5 // pred_check
        %p264 = pneg %p263
      $region38: #{tpu_custom_call.1} parent=5 // pred_check_branch
        %266 = sbr.rel (%p264) target = $region40
      $region39: #{tpu_custom_call.1} parent=5 // pred_region
        // Predicated region
        $region41: #{tpu_custom_call.1} parent=39 // pred_check
          %p267 = pneg %p52
        $region42: #{tpu_custom_call.1} parent=39 // pred_check_branch
          %269 = sbr.rel (%p267) target = $region44
        $region43: #{tpu_custom_call.1} parent=39 // pred_region
          %s270 = smul.u32 2, %s26
          %p271 = scmp.lt.s32.totalorder %s25, 1
          %s272 = scalar_select %p271, %s25, 1
          %p273 = scmp.lt.s32.totalorder %s270, 1
          %s274 = scalar_select %p273, %s270, 1
          %s275 = smul.addr %s272, 2
          %s276 = sadd.s32 %s274, %s275
          %s277 = smul.addr %s276, 4
          %s278 = scalar_lea.vmem %s0, %s277
          %s279 = smul.u32 2, %s26
        $region44: #{tpu_custom_call.1} parent=39 // pred_fallthru
          _
      $region40: #{tpu_custom_call.1} parent=5 // pred_fallthru
        _
      %p280 = scmp.le.s32.totalorder 1, %s18
      %p281 = scmp.lt.s32.totalorder %s18, 3
      %p282 = pnand %p280, %p281
      %p283 = pneg %p282
      // Predicated region
      $region45: #{tpu_custom_call.1} parent=5 // pred_check
        _
      $region46: #{tpu_custom_call.1} parent=5 // pred_check_branch
        %285 = sbr.rel (%p282) target = $region48
      $region47: #{tpu_custom_call.1} parent=5 // pred_region
        %s286 = ssub.s32 %s18, 1
        // Predicated region
        $region49: #{tpu_custom_call.1} parent=47 // pred_check
          %p287 = pneg %p121
        $region50: #{tpu_custom_call.1} parent=47 // pred_check_branch
          %289 = sbr.rel (%p287) target = $region52
        $region51: #{tpu_custom_call.1} parent=47 // pred_region
          %290 = dma.done [#allocation3], 512
        $region52: #{tpu_custom_call.1} parent=47 // pred_fallthru
          _
        // Predicated region
        $region53: #{tpu_custom_call.1} parent=47 // pred_check
          %p291 = pneg %p163
        $region54: #{tpu_custom_call.1} parent=47 // pred_check_branch
          %293 = sbr.rel (%p291) target = $region56
        $region55: #{tpu_custom_call.1} parent=47 // pred_region
          %294 = dma.done [#allocation6], 8192
        $region56: #{tpu_custom_call.1} parent=47 // pred_fallthru
          _
        %s295 = smul.u32 2, %s28
        %p296 = scmp.lt.s32.totalorder %s27, 1
        %s297 = scalar_select %p296, %s27, 1
        %p298 = scmp.lt.s32.totalorder %s295, 1
        %s299 = scalar_select %p298, %s295, 1
        %s300 = smul.addr %s297, 2
        %s301 = sadd.s32 %s299, %s300
        %s302 = smul.addr %s301, 4
        %s303 = scalar_lea.vmem %s0, %s302
        %p304 = pneg %p58
        %p305 = pneg %p55
        %p306 = pneg %p79
        %p307 = pneg %p76
        %p308 = pneg %p100
        %p309 = pneg %p97
        %p310 = pneg %p121
        %p311 = pneg %p118
        %p312 = pneg %p142
        %p313 = pneg %p139
        %p314 = pneg %p163
        %p315 = pneg %p160
        %p316 = pneg %p184
        %p317 = pneg %p181
        %p318 = pneg %p210
        %p319 = pneg %p207
        %s320 = sand.u32 %s197, 1
        %s321 = scalar_lea.sflag [#allocation4], %s320
        %s322 = sand.u32 %s197, 1
        %s323 = smul.addr %s322, 8
        %s324 = scalar_lea.vmem [#allocation7], %s323
        %s325 = smul.u32 2, %s28
        %p326 = scmp.lt.s32.totalorder %s27, 1
        %s327 = scalar_select %p326, %s27, 1
        %p328 = scmp.lt.s32.totalorder %s325, 1
        %s329 = scalar_select %p328, %s325, 1
        %s330 = smul.addr %s327, 2
        %s331 = sadd.s32 %s329, %s330
        %s332 = smul.addr %s331, 4
        %s333 = scalar_lea.vmem %s0, %s332
        %s334 = smul.u32 2, %s28
        %v336 = vld [vmem:[%s333] sm:$0xf]
        %v337 = vld [vmem:[%s333 + $0x4] sm:$0xf]
        %v338 = vld [vmem:[%s1] sm:$0x3]
        %v339 = vld [vmem:[%s2] sm:$0x1]
        %v341 = vlaneseq
        %v342 = vshrl.u32 %v341, 7
        %v343 = vsub.s32 0, %v342
        %v344 = vrot.slane %v339, %v343
        %v348 = vunpack.c.l.b16 %v336
        %v349 = vunpack.c.l.b16 %v337
        %v350 = vpack.c.b16 %v349, %v348
        %vm351 = vcmask 23552
        %v353 = vsel %vm351, %v350, 0
        %vm355 = vcmask 1040384
        %vm356 = vcmask 1041408
        %v357 = vsel %vm355, 4294967295, 65535
        %v358 = vsel %vm356, %v357, 0
        %v360 = vand.u32 %v338, %v358
        %362 = vmatprep.subr.bf16.mxu0 0
        %363 = vmatpush1.bf16.msra.mxu0 %v360
        %364 = vmatprep.subr.bf16.mxu0 0
        %365 = vmatpush1.bf16.msra.mxu0 0
        %366 = vmatprep.subr.bf16.mxu0 0
        %367 = vmatpush1.bf16.msra.mxu0 0
        %368 = vmatprep.subr.bf16.mxu0 0
        %369 = vmatpush1.bf16.msra.mxu0 0
        %370 = vmatprep.subr.bf16.mxu0 0
        %371 = vmatpush1.bf16.msra.mxu0 0
        %372 = vmatprep.subr.bf16.mxu0 0
        %373 = vmatpush1.bf16.msra.mxu0 0
        %374 = vmatprep.subr.bf16.mxu0 0
        %375 = vmatpush1.bf16.msra.mxu0 0
        %376 = vmatprep.subr.bf16.mxu0 0
        %377 = vmatpush1.bf16.msra.mxu0 0
        %378 = vmatprep.subr.bf16.mxu0 0
        %379 = vmatpush1.bf16.msra.mxu0 0
        %380 = vmatprep.subr.bf16.mxu0 0
        %381 = vmatpush1.bf16.msra.mxu0 0
        %382 = vmatprep.subr.bf16.mxu0 0
        %383 = vmatpush1.bf16.msra.mxu0 0
        %384 = vmatprep.subr.bf16.mxu0 0
        %385 = vmatpush1.bf16.msra.mxu0 0
        %386 = vmatprep.subr.bf16.mxu0 0
        %387 = vmatpush1.bf16.msra.mxu0 0
        %388 = vmatprep.subr.bf16.mxu0 0
        %389 = vmatpush1.bf16.msra.mxu0 0
        %390 = vmatprep.subr.bf16.mxu0 0
        %391 = vmatpush1.bf16.msra.mxu0 0
        %392 = vmatprep.subr.bf16.mxu0 0
        %393 = vmatpush1.bf16.msra.mxu0 0
        %394 = vmatprep.mubr.bf16.mxu0 0
        %395 = vmatmul.mubr.bf16.gmra.mrb[0].mxu0 %v353
        %v396 = vpop.f32.mrb[0].mxu0
        %v397 = vadd.f32 %v344, %v396
        %v398 = vpop.f32.mrb[0].mxu0
        %v399 = vpop.f32.mrb[0].mxu0
        %v400 = vadd.f32 %v344, %v399
        %v401 = vpop.f32.mrb[0].mxu0
        %402 = vdwg.mxu0
        %v403 = vmax.f32 %v397, 0.0
        %v404 = vmax.f32 %v400, 0.0
        %v405 = vpack.c.bf16 %v404, %v403
        %v406 = vld [vmem:[#allocation2] sm:$0xf]
        %v407 = vld [vmem:[#allocation2 + $0x4] sm:$0xf]
        %v408 = vld [vmem:[#allocation2 + $0x8] sm:$0xf]
        %v409 = vld [vmem:[#allocation2 + $0xc] sm:$0xf]
        %v410 = vld [vmem:[#allocation2 + $0x10] sm:$0xf]
        %v411 = vld [vmem:[#allocation2 + $0x14] sm:$0xf]
        %v412 = vld [vmem:[#allocation2 + $0x18] sm:$0xf]
        %v413 = vld [vmem:[#allocation2 + $0x1c] sm:$0xf]
        %v414 = vld [vmem:[%s4] sm:$0x1]
        %v416 = vlaneseq
        %v417 = vshrl.u32 %v416, 7
        %v418 = vsub.s32 0, %v417
        %v419 = vrot.slane %v414, %v418
        %v429 = vunpack.c.l.b16 %v406
        %v430 = vunpack.c.l.b16 %v407
        %v431 = vunpack.c.l.b16 %v408
        %v432 = vunpack.c.l.b16 %v409
        %v433 = vunpack.c.l.b16 %v410
        %v434 = vunpack.c.l.b16 %v411
        %v435 = vunpack.c.l.b16 %v412
        %v436 = vunpack.c.l.b16 %v413
        %v437 = vpack.c.b16 %v430, %v429
        %v438 = vpack.c.b16 %v432, %v431
        %v439 = vpack.c.b16 %v434, %v433
        %v440 = vpack.c.b16 %v436, %v435
        %vm445 = vcmask 523264
        %v447 = vsel %vm445, %v405, 0
        %449 = vmatprep.subr.bf16.mxu0 0
        %450 = vmatpush1.bf16.msra.mxu0 %v437
        %451 = vmatprep.subr.bf16.mxu0 0
        %452 = vmatpush1.bf16.msra.mxu0 %v438
        %453 = vmatprep.subr.bf16.mxu0 0
        %454 = vmatpush1.bf16.msra.mxu0 %v439
        %455 = vmatprep.subr.bf16.mxu0 0
        %456 = vmatpush1.bf16.msra.mxu0 %v440
        %457 = vmatprep.subr.bf16.mxu0 0
        %458 = vmatpush1.bf16.msra.mxu0 0
        %459 = vmatprep.subr.bf16.mxu0 0
        %460 = vmatpush1.bf16.msra.mxu0 0
        %461 = vmatprep.subr.bf16.mxu0 0
        %462 = vmatpush1.bf16.msra.mxu0 0
        %463 = vmatprep.subr.bf16.mxu0 0
        %464 = vmatpush1.bf16.msra.mxu0 0
        %465 = vmatprep.subr.bf16.mxu0 0
        %466 = vmatpush1.bf16.msra.mxu0 0
        %467 = vmatprep.subr.bf16.mxu0 0
        %468 = vmatpush1.bf16.msra.mxu0 0
        %469 = vmatprep.subr.bf16.mxu0 0
        %470 = vmatpush1.bf16.msra.mxu0 0
        %471 = vmatprep.subr.bf16.mxu0 0
        %472 = vmatpush1.bf16.msra.mxu0 0
        %473 = vmatprep.subr.bf16.mxu0 0
        %474 = vmatpush1.bf16.msra.mxu0 0
        %475 = vmatprep.subr.bf16.mxu0 0
        %476 = vmatpush1.bf16.msra.mxu0 0
        %477 = vmatprep.subr.bf16.mxu0 0
        %478 = vmatpush1.bf16.msra.mxu0 0
        %479 = vmatprep.subr.bf16.mxu0 0
        %480 = vmatpush1.bf16.msra.mxu0 0
        %481 = vmatprep.mubr.bf16.mxu0 0
        %482 = vmatmul.mubr.bf16.gmra.mrb[0].mxu0 %v447
        %v483 = vpop.f32.mrb[0].mxu0
        %v484 = vadd.f32 %v419, %v483
        %v485 = vpop.f32.mrb[0].mxu0
        %v486 = vpop.f32.mrb[0].mxu0
        %v487 = vadd.f32 %v419, %v486
        %v488 = vpop.f32.mrb[0].mxu0
        %489 = vdwg.mxu0
        %v490 = vmax.f32 %v484, 0.0
        %v491 = vmax.f32 %v487, 0.0
        %v492 = vpack.c.bf16 %v491, %v490
        %v493 = vld [vmem:[#allocation5] sm:$0xff]
        %v494 = vld [vmem:[#allocation5 + $0x8] sm:$0xff]
        %v495 = vld [vmem:[#allocation5 + $0x10] sm:$0xff]
        %v496 = vld [vmem:[#allocation5 + $0x18] sm:$0xff]
        %v497 = vld [vmem:[#allocation5 + $0x20] sm:$0xff]
        %v498 = vld [vmem:[#allocation5 + $0x28] sm:$0xff]
        %v499 = vld [vmem:[#allocation5 + $0x30] sm:$0xff]
        %v500 = vld [vmem:[#allocation5 + $0x38] sm:$0xff]
        %v501 = vld [vmem:[#allocation5 + $0x40] sm:$0xff]
        %v502 = vld [vmem:[#allocation5 + $0x48] sm:$0xff]
        %v503 = vld [vmem:[#allocation5 + $0x50] sm:$0xff]
        %v504 = vld [vmem:[#allocation5 + $0x58] sm:$0xff]
        %v505 = vld [vmem:[#allocation5 + $0x60] sm:$0xff]
        %v506 = vld [vmem:[#allocation5 + $0x68] sm:$0xff]
        %v507 = vld [vmem:[#allocation5 + $0x70] sm:$0xff]
        %v508 = vld [vmem:[#allocation5 + $0x78] sm:$0xff]
        %v509 = vld [vmem:[#allocation5 + $0x80] sm:$0xff]
        %v510 = vld [vmem:[#allocation5 + $0x88] sm:$0xff]
        %v511 = vld [vmem:[#allocation5 + $0x90] sm:$0xff]
        %v512 = vld [vmem:[#allocation5 + $0x98] sm:$0xff]
        %v513 = vld [vmem:[#allocation5 + $0xa0] sm:$0xff]
        %v514 = vld [vmem:[#allocation5 + $0xa8] sm:$0xff]
        %v515 = vld [vmem:[#allocation5 + $0xb0] sm:$0xff]
        %v516 = vld [vmem:[#allocation5 + $0xb8] sm:$0xff]
        %v517 = vld [vmem:[#allocation5 + $0xc0] sm:$0xff]
        %v518 = vld [vmem:[#allocation5 + $0xc8] sm:$0xff]
        %v519 = vld [vmem:[#allocation5 + $0xd0] sm:$0xff]
        %v520 = vld [vmem:[#allocation5 + $0xd8] sm:$0xff]
        %v521 = vld [vmem:[#allocation5 + $0xe0] sm:$0xff]
        %v522 = vld [vmem:[#allocation5 + $0xe8] sm:$0xff]
        %v523 = vld [vmem:[#allocation5 + $0xf0] sm:$0xff]
        %v524 = vld [vmem:[#allocation5 + $0xf8] sm:$0xff]
        %v525 = vld [vmem:[#allocation5 + $0x100] sm:$0xff]
        %v526 = vld [vmem:[#allocation5 + $0x108] sm:$0xff]
        %v527 = vld [vmem:[#allocation5 + $0x110] sm:$0xff]
        %v528 = vld [vmem:[#allocation5 + $0x118] sm:$0xff]
        %v529 = vld [vmem:[#allocation5 + $0x120] sm:$0xff]
        %v530 = vld [vmem:[#allocation5 + $0x128] sm:$0xff]
        %v531 = vld [vmem:[#allocation5 + $0x130] sm:$0xff]
        %v532 = vld [vmem:[#allocation5 + $0x138] sm:$0xff]
        %v533 = vld [vmem:[#allocation5 + $0x140] sm:$0xff]
        %v534 = vld [vmem:[#allocation5 + $0x148] sm:$0xff]
        %v535 = vld [vmem:[#allocation5 + $0x150] sm:$0xff]
        %v536 = vld [vmem:[#allocation5 + $0x158] sm:$0xff]
        %v537 = vld [vmem:[#allocation5 + $0x160] sm:$0xff]
        %v538 = vld [vmem:[#allocation5 + $0x168] sm:$0xff]
        %v539 = vld [vmem:[#allocation5 + $0x170] sm:$0xff]
        %v540 = vld [vmem:[#allocation5 + $0x178] sm:$0xff]
        %v541 = vld [vmem:[#allocation5 + $0x180] sm:$0xff]
        %v542 = vld [vmem:[#allocation5 + $0x188] sm:$0xff]
        %v543 = vld [vmem:[#allocation5 + $0x190] sm:$0xff]
        %v544 = vld [vmem:[#allocation5 + $0x198] sm:$0xff]
        %v545 = vld [vmem:[#allocation5 + $0x1a0] sm:$0xff]
        %v546 = vld [vmem:[#allocation5 + $0x1a8] sm:$0xff]
        %v547 = vld [vmem:[#allocation5 + $0x1b0] sm:$0xff]
        %v548 = vld [vmem:[#allocation5 + $0x1b8] sm:$0xff]
        %v549 = vld [vmem:[#allocation5 + $0x1c0] sm:$0xff]
        %v550 = vld [vmem:[#allocation5 + $0x1c8] sm:$0xff]
        %v551 = vld [vmem:[#allocation5 + $0x1d0] sm:$0xff]
        %v552 = vld [vmem:[#allocation5 + $0x1d8] sm:$0xff]
        %v553 = vld [vmem:[#allocation5 + $0x1e0] sm:$0xff]
        %v554 = vld [vmem:[#allocation5 + $0x1e8] sm:$0xff]
        %v555 = vld [vmem:[#allocation5 + $0x1f0] sm:$0xff]
        %v556 = vld [vmem:[#allocation5 + $0x1f8] sm:$0xff]
        %v557 = vld [vmem:[%s6] sm:$0xff]
        %v559 = vlaneseq
        %v560 = vshrl.u32 %v559, 7
        %v561 = vsub.s32 0, %v560
        %v562 = vrot.slane %v557, %v561
        %v563 = vlaneseq
        %v564 = vshrl.u32 %v563, 7
        %v565 = vsub.s32 1, %v564
        %v566 = vrot.slane %v557, %v565
        %v567 = vlaneseq
        %v568 = vshrl.u32 %v567, 7
        %v569 = vsub.s32 2, %v568
        %v570 = vrot.slane %v557, %v569
        %v571 = vlaneseq
        %v572 = vshrl.u32 %v571, 7
        %v573 = vsub.s32 3, %v572
        %v574 = vrot.slane %v557, %v573
        %v575 = vlaneseq
        %v576 = vshrl.u32 %v575, 7
        %v577 = vsub.s32 4, %v576
        %v578 = vrot.slane %v557, %v577
        %v579 = vlaneseq
        %v580 = vshrl.u32 %v579, 7
        %v581 = vsub.s32 5, %v580
        %v582 = vrot.slane %v557, %v581
        %v583 = vlaneseq
        %v584 = vshrl.u32 %v583, 7
        %v585 = vsub.s32 6, %v584
        %v586 = vrot.slane %v557, %v585
        %v587 = vlaneseq
        %v588 = vshrl.u32 %v587, 7
        %v589 = vsub.s32 7, %v588
        %v590 = vrot.slane %v557, %v589
        %v663 = vunpack.c.l.b16 %v493
        %v664 = vunpack.c.h.b16 %v493
        %v665 = vunpack.c.l.b16 %v494
        %v666 = vunpack.c.h.b16 %v494
        %v667 = vunpack.c.l.b16 %v495
        %v668 = vunpack.c.h.b16 %v495
        %v669 = vunpack.c.l.b16 %v496
        %v670 = vunpack.c.h.b16 %v496
        %v671 = vunpack.c.l.b16 %v497
        %v672 = vunpack.c.h.b16 %v497
        %v673 = vunpack.c.l.b16 %v498
        %v674 = vunpack.c.h.b16 %v498
        %v675 = vunpack.c.l.b16 %v499
        %v676 = vunpack.c.h.b16 %v499
        %v677 = vunpack.c.l.b16 %v500
        %v678 = vunpack.c.h.b16 %v500
        %v679 = vunpack.c.l.b16 %v501
        %v680 = vunpack.c.h.b16 %v501
        %v681 = vunpack.c.l.b16 %v502
        %v682 = vunpack.c.h.b16 %v502
        %v683 = vunpack.c.l.b16 %v503
        %v684 = vunpack.c.h.b16 %v503
        %v685 = vunpack.c.l.b16 %v504
        %v686 = vunpack.c.h.b16 %v504
        %v687 = vunpack.c.l.b16 %v505
        %v688 = vunpack.c.h.b16 %v505
        %v689 = vunpack.c.l.b16 %v506
        %v690 = vunpack.c.h.b16 %v506
        %v691 = vunpack.c.l.b16 %v507
        %v692 = vunpack.c.h.b16 %v507
        %v693 = vunpack.c.l.b16 %v508
        %v694 = vunpack.c.h.b16 %v508
        %v695 = vunpack.c.l.b16 %v509
        %v696 = vunpack.c.h.b16 %v509
        %v697 = vunpack.c.l.b16 %v510
        %v698 = vunpack.c.h.b16 %v510
        %v699 = vunpack.c.l.b16 %v511
        %v700 = vunpack.c.h.b16 %v511
        %v701 = vunpack.c.l.b16 %v512
        %v702 = vunpack.c.h.b16 %v512
        %v703 = vunpack.c.l.b16 %v513
        %v704 = vunpack.c.h.b16 %v513
        %v705 = vunpack.c.l.b16 %v514
        %v706 = vunpack.c.h.b16 %v514
        %v707 = vunpack.c.l.b16 %v515
        %v708 = vunpack.c.h.b16 %v515
        %v709 = vunpack.c.l.b16 %v516
        %v710 = vunpack.c.h.b16 %v516
        %v711 = vunpack.c.l.b16 %v517
        %v712 = vunpack.c.h.b16 %v517
        %v713 = vunpack.c.l.b16 %v518
        %v714 = vunpack.c.h.b16 %v518
        %v715 = vunpack.c.l.b16 %v519
        %v716 = vunpack.c.h.b16 %v519
        %v717 = vunpack.c.l.b16 %v520
        %v718 = vunpack.c.h.b16 %v520
        %v719 = vunpack.c.l.b16 %v521
        %v720 = vunpack.c.h.b16 %v521
        %v721 = vunpack.c.l.b16 %v522
        %v722 = vunpack.c.h.b16 %v522
        %v723 = vunpack.c.l.b16 %v523
        %v724 = vunpack.c.h.b16 %v523
        %v725 = vunpack.c.l.b16 %v524
        %v726 = vunpack.c.h.b16 %v524
        %v727 = vunpack.c.l.b16 %v525
        %v728 = vunpack.c.h.b16 %v525
        %v729 = vunpack.c.l.b16 %v526
        %v730 = vunpack.c.h.b16 %v526
        %v731 = vunpack.c.l.b16 %v527
        %v732 = vunpack.c.h.b16 %v527
        %v733 = vunpack.c.l.b16 %v528
        %v734 = vunpack.c.h.b16 %v528
        %v735 = vunpack.c.l.b16 %v529
        %v736 = vunpack.c.h.b16 %v529
        %v737 = vunpack.c.l.b16 %v530
        %v738 = vunpack.c.h.b16 %v530
        %v739 = vunpack.c.l.b16 %v531
        %v740 = vunpack.c.h.b16 %v531
        %v741 = vunpack.c.l.b16 %v532
        %v742 = vunpack.c.h.b16 %v532
        %v743 = vunpack.c.l.b16 %v533
        %v744 = vunpack.c.h.b16 %v533
        %v745 = vunpack.c.l.b16 %v534
        %v746 = vunpack.c.h.b16 %v534
        %v747 = vunpack.c.l.b16 %v535
        %v748 = vunpack.c.h.b16 %v535
        %v749 = vunpack.c.l.b16 %v536
        %v750 = vunpack.c.h.b16 %v536
        %v751 = vunpack.c.l.b16 %v537
        %v752 = vunpack.c.h.b16 %v537
        %v753 = vunpack.c.l.b16 %v538
        %v754 = vunpack.c.h.b16 %v538
        %v755 = vunpack.c.l.b16 %v539
        %v756 = vunpack.c.h.b16 %v539
        %v757 = vunpack.c.l.b16 %v540
        %v758 = vunpack.c.h.b16 %v540
        %v759 = vunpack.c.l.b16 %v541
        %v760 = vunpack.c.h.b16 %v541
        %v761 = vunpack.c.l.b16 %v542
        %v762 = vunpack.c.h.b16 %v542
        %v763 = vunpack.c.l.b16 %v543
        %v764 = vunpack.c.h.b16 %v543
        %v765 = vunpack.c.l.b16 %v544
        %v766 = vunpack.c.h.b16 %v544
        %v767 = vunpack.c.l.b16 %v545
        %v768 = vunpack.c.h.b16 %v545
        %v769 = vunpack.c.l.b16 %v546
        %v770 = vunpack.c.h.b16 %v546
        %v771 = vunpack.c.l.b16 %v547
        %v772 = vunpack.c.h.b16 %v547
        %v773 = vunpack.c.l.b16 %v548
        %v774 = vunpack.c.h.b16 %v548
        %v775 = vunpack.c.l.b16 %v549
        %v776 = vunpack.c.h.b16 %v549
        %v777 = vunpack.c.l.b16 %v550
        %v778 = vunpack.c.h.b16 %v550
        %v779 = vunpack.c.l.b16 %v551
        %v780 = vunpack.c.h.b16 %v551
        %v781 = vunpack.c.l.b16 %v552
        %v782 = vunpack.c.h.b16 %v552
        %v783 = vunpack.c.l.b16 %v553
        %v784 = vunpack.c.h.b16 %v553
        %v785 = vunpack.c.l.b16 %v554
        %v786 = vunpack.c.h.b16 %v554
        %v787 = vunpack.c.l.b16 %v555
        %v788 = vunpack.c.h.b16 %v555
        %v789 = vunpack.c.l.b16 %v556
        %v790 = vunpack.c.h.b16 %v556
        %v791 = vpack.c.b16 %v671, %v663
        %v792 = vpack.c.b16 %v672, %v664
        %v793 = vpack.c.b16 %v673, %v665
        %v794 = vpack.c.b16 %v674, %v666
        %v795 = vpack.c.b16 %v675, %v667
        %v796 = vpack.c.b16 %v676, %v668
        %v797 = vpack.c.b16 %v677, %v669
        %v798 = vpack.c.b16 %v678, %v670
        %v799 = vpack.c.b16 %v687, %v679
        %v800 = vpack.c.b16 %v688, %v680
        %v801 = vpack.c.b16 %v689, %v681
        %v802 = vpack.c.b16 %v690, %v682
        %v803 = vpack.c.b16 %v691, %v683
        %v804 = vpack.c.b16 %v692, %v684
        %v805 = vpack.c.b16 %v693, %v685
        %v806 = vpack.c.b16 %v694, %v686
        %v807 = vpack.c.b16 %v703, %v695
        %v808 = vpack.c.b16 %v704, %v696
        %v809 = vpack.c.b16 %v705, %v697
        %v810 = vpack.c.b16 %v706, %v698
        %v811 = vpack.c.b16 %v707, %v699
        %v812 = vpack.c.b16 %v708, %v700
        %v813 = vpack.c.b16 %v709, %v701
        %v814 = vpack.c.b16 %v710, %v702
        %v815 = vpack.c.b16 %v719, %v711
        %v816 = vpack.c.b16 %v720, %v712
        %v817 = vpack.c.b16 %v721, %v713
        %v818 = vpack.c.b16 %v722, %v714
        %v819 = vpack.c.b16 %v723, %v715
        %v820 = vpack.c.b16 %v724, %v716
        %v821 = vpack.c.b16 %v725, %v717
        %v822 = vpack.c.b16 %v726, %v718
        %v823 = vpack.c.b16 %v735, %v727
        %v824 = vpack.c.b16 %v736, %v728
        %v825 = vpack.c.b16 %v737, %v729
        %v826 = vpack.c.b16 %v738, %v730
        %v827 = vpack.c.b16 %v739, %v731
        %v828 = vpack.c.b16 %v740, %v732
        %v829 = vpack.c.b16 %v741, %v733
        %v830 = vpack.c.b16 %v742, %v734
        %v831 = vpack.c.b16 %v751, %v743
        %v832 = vpack.c.b16 %v752, %v744
        %v833 = vpack.c.b16 %v753, %v745
        %v834 = vpack.c.b16 %v754, %v746
        %v835 = vpack.c.b16 %v755, %v747
        %v836 = vpack.c.b16 %v756, %v748
        %v837 = vpack.c.b16 %v757, %v749
        %v838 = vpack.c.b16 %v758, %v750
        %v839 = vpack.c.b16 %v767, %v759
        %v840 = vpack.c.b16 %v768, %v760
        %v841 = vpack.c.b16 %v769, %v761
        %v842 = vpack.c.b16 %v770, %v762
        %v843 = vpack.c.b16 %v771, %v763
        %v844 = vpack.c.b16 %v772, %v764
        %v845 = vpack.c.b16 %v773, %v765
        %v846 = vpack.c.b16 %v774, %v766
        %v847 = vpack.c.b16 %v783, %v775
        %v848 = vpack.c.b16 %v784, %v776
        %v849 = vpack.c.b16 %v785, %v777
        %v850 = vpack.c.b16 %v786, %v778
        %v851 = vpack.c.b16 %v787, %v779
        %v852 = vpack.c.b16 %v788, %v780
        %v853 = vpack.c.b16 %v789, %v781
        %v854 = vpack.c.b16 %v790, %v782
        %919 = vmatprep.subr.bf16.mxu0 %v792
        %920 = vmatpush1.bf16.msra.mxu0 %v791
        %921 = vmatprep.subr.bf16.mxu0 %v800
        %922 = vmatpush1.bf16.msra.mxu0 %v799
        %923 = vmatprep.subr.bf16.mxu0 %v808
        %924 = vmatpush1.bf16.msra.mxu0 %v807
        %925 = vmatprep.subr.bf16.mxu0 %v816
        %926 = vmatpush1.bf16.msra.mxu0 %v815
        %927 = vmatprep.subr.bf16.mxu0 %v824
        %928 = vmatpush1.bf16.msra.mxu0 %v823
        %929 = vmatprep.subr.bf16.mxu0 %v832
        %930 = vmatpush1.bf16.msra.mxu0 %v831
        %931 = vmatprep.subr.bf16.mxu0 %v840
        %932 = vmatpush1.bf16.msra.mxu0 %v839
        %933 = vmatprep.subr.bf16.mxu0 %v848
        %934 = vmatpush1.bf16.msra.mxu0 %v847
        %935 = vmatprep.subr.bf16.mxu0 0
        %936 = vmatpush1.bf16.msra.mxu0 0
        %937 = vmatprep.subr.bf16.mxu0 0
        %938 = vmatpush1.bf16.msra.mxu0 0
        %939 = vmatprep.subr.bf16.mxu0 0
        %940 = vmatpush1.bf16.msra.mxu0 0
        %941 = vmatprep.subr.bf16.mxu0 0
        %942 = vmatpush1.bf16.msra.mxu0 0
        %943 = vmatprep.subr.bf16.mxu0 0
        %944 = vmatpush1.bf16.msra.mxu0 0
        %945 = vmatprep.subr.bf16.mxu0 0
        %946 = vmatpush1.bf16.msra.mxu0 0
        %947 = vmatprep.subr.bf16.mxu0 0
        %948 = vmatpush1.bf16.msra.mxu0 0
        %949 = vmatprep.subr.bf16.mxu0 0
        %950 = vmatpush1.bf16.msra.mxu0 0
        %951 = vmatprep.mubr.bf16.mxu0 0
        %952 = vmatmul.mubr.bf16.gmra.mrb[0].mxu0 %v492
        %v953 = vpop.f32.mrb[0].mxu0
        %v954 = vadd.f32 %v562, %v953
        %v955 = vpop.f32.mrb[0].mxu0
        %v956 = vadd.f32 %v566, %v955
        %v957 = vpop.f32.mrb[0].mxu0
        %v958 = vadd.f32 %v562, %v957
        %v959 = vpop.f32.mrb[0].mxu0
        %v960 = vadd.f32 %v566, %v959
        %961 = vdwg.mxu0
        %962 = vmatprep.subr.bf16.mxu0 %v794
        %963 = vmatpush1.bf16.msra.mxu0 %v793
        %964 = vmatprep.subr.bf16.mxu0 %v802
        %965 = vmatpush1.bf16.msra.mxu0 %v801
        %966 = vmatprep.subr.bf16.mxu0 %v810
        %967 = vmatpush1.bf16.msra.mxu0 %v809
        %968 = vmatprep.subr.bf16.mxu0 %v818
        %969 = vmatpush1.bf16.msra.mxu0 %v817
        %970 = vmatprep.subr.bf16.mxu0 %v826
        %971 = vmatpush1.bf16.msra.mxu0 %v825
        %972 = vmatprep.subr.bf16.mxu0 %v834
        %973 = vmatpush1.bf16.msra.mxu0 %v833
        %974 = vmatprep.subr.bf16.mxu0 %v842
        %975 = vmatpush1.bf16.msra.mxu0 %v841
        %976 = vmatprep.subr.bf16.mxu0 %v850
        %977 = vmatpush1.bf16.msra.mxu0 %v849
        %978 = vmatprep.subr.bf16.mxu0 0
        %979 = vmatpush1.bf16.msra.mxu0 0
        %980 = vmatprep.subr.bf16.mxu0 0
        %981 = vmatpush1.bf16.msra.mxu0 0
        %982 = vmatprep.subr.bf16.mxu0 0
        %983 = vmatpush1.bf16.msra.mxu0 0
        %984 = vmatprep.subr.bf16.mxu0 0
        %985 = vmatpush1.bf16.msra.mxu0 0
        %986 = vmatprep.subr.bf16.mxu0 0
        %987 = vmatpush1.bf16.msra.mxu0 0
        %988 = vmatprep.subr.bf16.mxu0 0
        %989 = vmatpush1.bf16.msra.mxu0 0
        %990 = vmatprep.subr.bf16.mxu0 0
        %991 = vmatpush1.bf16.msra.mxu0 0
        %992 = vmatprep.subr.bf16.mxu0 0
        %993 = vmatpush1.bf16.msra.mxu0 0
        %994 = vmatprep.mubr.bf16.mxu0 0
        %995 = vmatmul.mubr.bf16.gmra.mrb[0].mxu0 %v492
        %v996 = vpop.f32.mrb[0].mxu0
        %v997 = vadd.f32 %v570, %v996
        %v998 = vpop.f32.mrb[0].mxu0
        %v999 = vadd.f32 %v574, %v998
        %v1000 = vpop.f32.mrb[0].mxu0
        %v1001 = vadd.f32 %v570, %v1000
        %v1002 = vpop.f32.mrb[0].mxu0
        %v1003 = vadd.f32 %v574, %v1002
        %1004 = vdwg.mxu0
        %1005 = vmatprep.subr.bf16.mxu0 %v796
        %1006 = vmatpush1.bf16.msra.mxu0 %v795
        %1007 = vmatprep.subr.bf16.mxu0 %v804
        %1008 = vmatpush1.bf16.msra.mxu0 %v803
        %1009 = vmatprep.subr.bf16.mxu0 %v812
        %1010 = vmatpush1.bf16.msra.mxu0 %v811
        %1011 = vmatprep.subr.bf16.mxu0 %v820
        %1012 = vmatpush1.bf16.msra.mxu0 %v819
        %1013 = vmatprep.subr.bf16.mxu0 %v828
        %1014 = vmatpush1.bf16.msra.mxu0 %v827
        %1015 = vmatprep.subr.bf16.mxu0 %v836
        %1016 = vmatpush1.bf16.msra.mxu0 %v835
        %1017 = vmatprep.subr.bf16.mxu0 %v844
        %1018 = vmatpush1.bf16.msra.mxu0 %v843
        %1019 = vmatprep.subr.bf16.mxu0 %v852
        %1020 = vmatpush1.bf16.msra.mxu0 %v851
        %1021 = vmatprep.subr.bf16.mxu0 0
        %1022 = vmatpush1.bf16.msra.mxu0 0
        %1023 = vmatprep.subr.bf16.mxu0 0
        %1024 = vmatpush1.bf16.msra.mxu0 0
        %1025 = vmatprep.subr.bf16.mxu0 0
        %1026 = vmatpush1.bf16.msra.mxu0 0
        %1027 = vmatprep.subr.bf16.mxu0 0
        %1028 = vmatpush1.bf16.msra.mxu0 0
        %1029 = vmatprep.subr.bf16.mxu0 0
        %1030 = vmatpush1.bf16.msra.mxu0 0
        %1031 = vmatprep.subr.bf16.mxu0 0
        %1032 = vmatpush1.bf16.msra.mxu0 0
        %1033 = vmatprep.subr.bf16.mxu0 0
        %1034 = vmatpush1.bf16.msra.mxu0 0
        %1035 = vmatprep.subr.bf16.mxu0 0
        %1036 = vmatpush1.bf16.msra.mxu0 0
        %1037 = vmatprep.mubr.bf16.mxu0 0
        %1038 = vmatmul.mubr.bf16.gmra.mrb[0].mxu0 %v492
        %v1039 = vpop.f32.mrb[0].mxu0
        %v1040 = vadd.f32 %v578, %v1039
        %v1041 = vpop.f32.mrb[0].mxu0
        %v1042 = vadd.f32 %v582, %v1041
        %v1043 = vpop.f32.mrb[0].mxu0
        %v1044 = vadd.f32 %v578, %v1043
        %v1045 = vpop.f32.mrb[0].mxu0
        %v1046 = vadd.f32 %v582, %v1045
        %1047 = vdwg.mxu0
        %1048 = vmatprep.subr.bf16.mxu0 %v798
        %1049 = vmatpush1.bf16.msra.mxu0 %v797
        %1050 = vmatprep.subr.bf16.mxu0 %v806
        %1051 = vmatpush1.bf16.msra.mxu0 %v805
        %1052 = vmatprep.subr.bf16.mxu0 %v814
        %1053 = vmatpush1.bf16.msra.mxu0 %v813
        %1054 = vmatprep.subr.bf16.mxu0 %v822
        %1055 = vmatpush1.bf16.msra.mxu0 %v821
        %1056 = vmatprep.subr.bf16.mxu0 %v830
        %1057 = vmatpush1.bf16.msra.mxu0 %v829
        %1058 = vmatprep.subr.bf16.mxu0 %v838
        %1059 = vmatpush1.bf16.msra.mxu0 %v837
        %1060 = vmatprep.subr.bf16.mxu0 %v846
        %1061 = vmatpush1.bf16.msra.mxu0 %v845
        %1062 = vmatprep.subr.bf16.mxu0 %v854
        %1063 = vmatpush1.bf16.msra.mxu0 %v853
        %1064 = vmatprep.subr.bf16.mxu0 0
        %1065 = vmatpush1.bf16.msra.mxu0 0
        %1066 = vmatprep.subr.bf16.mxu0 0
        %1067 = vmatpush1.bf16.msra.mxu0 0
        %1068 = vmatprep.subr.bf16.mxu0 0
        %1069 = vmatpush1.bf16.msra.mxu0 0
        %1070 = vmatprep.subr.bf16.mxu0 0
        %1071 = vmatpush1.bf16.msra.mxu0 0
        %1072 = vmatprep.subr.bf16.mxu0 0
        %1073 = vmatpush1.bf16.msra.mxu0 0
        %1074 = vmatprep.subr.bf16.mxu0 0
        %1075 = vmatpush1.bf16.msra.mxu0 0
        %1076 = vmatprep.subr.bf16.mxu0 0
        %1077 = vmatpush1.bf16.msra.mxu0 0
        %1078 = vmatprep.subr.bf16.mxu0 0
        %1079 = vmatpush1.bf16.msra.mxu0 0
        %1080 = vmatprep.mubr.bf16.mxu0 0
        %1081 = vmatmul.mubr.bf16.gmra.mrb[0].mxu0 %v492
        %v1082 = vpop.f32.mrb[0].mxu0
        %v1083 = vadd.f32 %v586, %v1082
        %v1084 = vpop.f32.mrb[0].mxu0
        %v1085 = vadd.f32 %v590, %v1084
        %v1086 = vpop.f32.mrb[0].mxu0
        %v1087 = vadd.f32 %v586, %v1086
        %v1088 = vpop.f32.mrb[0].mxu0
        %v1089 = vadd.f32 %v590, %v1088
        %1090 = vdwg.mxu0
        %v1091 = vmax.f32 %v954, 0.0
        %v1092 = vmax.f32 %v956, 0.0
        %v1093 = vmax.f32 %v997, 0.0
        %v1094 = vmax.f32 %v999, 0.0
        %v1095 = vmax.f32 %v1040, 0.0
        %v1096 = vmax.f32 %v1042, 0.0
        %v1097 = vmax.f32 %v1083, 0.0
        %v1098 = vmax.f32 %v1085, 0.0
        %v1099 = vmax.f32 %v958, 0.0
        %v1100 = vmax.f32 %v960, 0.0
        %v1101 = vmax.f32 %v1001, 0.0
        %v1102 = vmax.f32 %v1003, 0.0
        %v1103 = vmax.f32 %v1044, 0.0
        %v1104 = vmax.f32 %v1046, 0.0
        %v1105 = vmax.f32 %v1087, 0.0
        %v1106 = vmax.f32 %v1089, 0.0
        %v1107 = vmax.f32 %v1091, %v1099
        %v1108 = vrot.slane %v1107, 4
        %v1109 = vmax.f32 %v1107, %v1108
        %v1110 = vrot.slane %v1109, 2
        %v1111 = vmax.f32 %v1109, %v1110
        %v1112 = vrot.slane %v1111, 1
        %v1113 = vmax.f32 %v1111, %v1112
        %v1114 = vmax.f32 %v1092, %v1100
        %v1115 = vrot.slane %v1114, 4
        %v1116 = vmax.f32 %v1114, %v1115
        %v1117 = vrot.slane %v1116, 2
        %v1118 = vmax.f32 %v1116, %v1117
        %v1119 = vrot.slane %v1118, 1
        %v1120 = vmax.f32 %v1118, %v1119
        %v1121 = vmax.f32 %v1093, %v1101
        %v1122 = vrot.slane %v1121, 4
        %v1123 = vmax.f32 %v1121, %v1122
        %v1124 = vrot.slane %v1123, 2
        %v1125 = vmax.f32 %v1123, %v1124
        %v1126 = vrot.slane %v1125, 1
        %v1127 = vmax.f32 %v1125, %v1126
        %v1128 = vmax.f32 %v1094, %v1102
        %v1129 = vrot.slane %v1128, 4
        %v1130 = vmax.f32 %v1128, %v1129
        %v1131 = vrot.slane %v1130, 2
        %v1132 = vmax.f32 %v1130, %v1131
        %v1133 = vrot.slane %v1132, 1
        %v1134 = vmax.f32 %v1132, %v1133
        %v1135 = vmax.f32 %v1095, %v1103
        %v1136 = vrot.slane %v1135, 4
        %v1137 = vmax.f32 %v1135, %v1136
        %v1138 = vrot.slane %v1137, 2
        %v1139 = vmax.f32 %v1137, %v1138
        %v1140 = vrot.slane %v1139, 1
        %v1141 = vmax.f32 %v1139, %v1140
        %v1142 = vmax.f32 %v1096, %v1104
        %v1143 = vrot.slane %v1142, 4
        %v1144 = vmax.f32 %v1142, %v1143
        %v1145 = vrot.slane %v1144, 2
        %v1146 = vmax.f32 %v1144, %v1145
        %v1147 = vrot.slane %v1146, 1
        %v1148 = vmax.f32 %v1146, %v1147
        %v1149 = vmax.f32 %v1097, %v1105
        %v1150 = vrot.slane %v1149, 4
        %v1151 = vmax.f32 %v1149, %v1150
        %v1152 = vrot.slane %v1151, 2
        %v1153 = vmax.f32 %v1151, %v1152
        %v1154 = vrot.slane %v1153, 1
        %v1155 = vmax.f32 %v1153, %v1154
        %v1156 = vmax.f32 %v1098, %v1106
        %v1157 = vrot.slane %v1156, 4
        %v1158 = vmax.f32 %v1156, %v1157
        %v1159 = vrot.slane %v1158, 2
        %v1160 = vmax.f32 %v1158, %v1159
        %v1161 = vrot.slane %v1160, 1
        %v1162 = vmax.f32 %v1160, %v1161
        %p1163 = scmp.eq.s32.totalorder %s28, 0
        // Predicated region
        $region57: #{tpu_custom_call.1} parent=47 // pred_check
          %p1164 = pneg %p1163
        $region58: #{tpu_custom_call.1} parent=47 // pred_check_branch
          %1166 = sbr.rel (%p1164) target = $region60
        $region59: #{tpu_custom_call.1} parent=47 // pred_region
          %v1175 = vcombine.low %v1113, %v1120
          %v1176 = vcombine.low %v1127, %v1134
          %v1177 = vcombine.low %v1141, %v1148
          %v1178 = vcombine.low %v1155, %v1162
          %v1180 = vunpack.c.l.s4 1966171168
          %v1181 = vunpack.c.0.s8 %v1180
          %v1182 = vlaneseq
          %v1183 = vshrl.u32 %v1182, 7
          %v1184 = vsub.s32 %v1181, %v1183
          %v1185 = vrot.slane %v1175, %v1184
          %v1187 = vunpack.c.l.s4 1966171168
          %v1188 = vunpack.c.0.s8 %v1187
          %v1189 = vlaneseq
          %v1190 = vshrl.u32 %v1189, 7
          %v1191 = vsub.s32 %v1188, %v1190
          %v1192 = vrot.slane %v1176, %v1191
          %v1194 = vunpack.c.l.s4 1966171168
          %v1195 = vunpack.c.0.s8 %v1194
          %v1196 = vlaneseq
          %v1197 = vshrl.u32 %v1196, 7
          %v1198 = vsub.s32 %v1195, %v1197
          %v1199 = vrot.slane %v1177, %v1198
          %v1201 = vunpack.c.l.s4 1966171168
          %v1202 = vunpack.c.0.s8 %v1201
          %v1203 = vlaneseq
          %v1204 = vshrl.u32 %v1203, 7
          %v1205 = vsub.s32 %v1202, %v1204
          %v1206 = vrot.slane %v1178, %v1205
          %v1207 = vcombine.low %v1185, %v1192
          %v1208 = vcombine.low %v1199, %v1206
          %v1210 = vunpack.c.l.s4 1966171168
          %v1211 = vunpack.c.0.s8 %v1210
          %v1212 = vlaneseq
          %v1213 = vshrl.u32 %v1212, 7
          %v1214 = vsub.s32 %v1211, %v1213
          %v1215 = vrot.slane %v1207, %v1214
          %v1217 = vunpack.c.l.s4 1966171168
          %v1218 = vunpack.c.0.s8 %v1217
          %v1219 = vlaneseq
          %v1220 = vshrl.u32 %v1219, 7
          %v1221 = vsub.s32 %v1218, %v1220
          %v1222 = vrot.slane %v1208, %v1221
          %v1223 = vcombine.low %v1215, %v1222
          %1225 = vst [vmem:[%s324] sm:$0xff] %v1223
        $region60: #{tpu_custom_call.1} parent=47 // pred_fallthru
          _
        %p1226 = scmp.ne.s32.totalorder %s28, 0
        // Predicated region
        $region61: #{tpu_custom_call.1} parent=47 // pred_check
          %p1227 = pneg %p1226
        $region62: #{tpu_custom_call.1} parent=47 // pred_check_branch
          %1229 = sbr.rel (%p1227) target = $region64
        $region63: #{tpu_custom_call.1} parent=47 // pred_region
          %v1230 = vld [vmem:[%s324] sm:$0xff]
          %v1239 = vcombine.low %v1113, %v1120
          %v1240 = vcombine.low %v1127, %v1134
          %v1241 = vcombine.low %v1141, %v1148
          %v1242 = vcombine.low %v1155, %v1162
          %v1244 = vunpack.c.l.s4 1966171168
          %v1245 = vunpack.c.0.s8 %v1244
          %v1246 = vlaneseq
          %v1247 = vshrl.u32 %v1246, 7
          %v1248 = vsub.s32 %v1245, %v1247
          %v1249 = vrot.slane %v1239, %v1248
          %v1251 = vunpack.c.l.s4 1966171168
          %v1252 = vunpack.c.0.s8 %v1251
          %v1253 = vlaneseq
          %v1254 = vshrl.u32 %v1253, 7
          %v1255 = vsub.s32 %v1252, %v1254
          %v1256 = vrot.slane %v1240, %v1255
          %v1258 = vunpack.c.l.s4 1966171168
          %v1259 = vunpack.c.0.s8 %v1258
          %v1260 = vlaneseq
          %v1261 = vshrl.u32 %v1260, 7
          %v1262 = vsub.s32 %v1259, %v1261
          %v1263 = vrot.slane %v1241, %v1262
          %v1265 = vunpack.c.l.s4 1966171168
          %v1266 = vunpack.c.0.s8 %v1265
          %v1267 = vlaneseq
          %v1268 = vshrl.u32 %v1267, 7
          %v1269 = vsub.s32 %v1266, %v1268
          %v1270 = vrot.slane %v1242, %v1269
          %v1271 = vcombine.low %v1249, %v1256
          %v1272 = vcombine.low %v1263, %v1270
          %v1274 = vunpack.c.l.s4 1966171168
          %v1275 = vunpack.c.0.s8 %v1274
          %v1276 = vlaneseq
          %v1277 = vshrl.u32 %v1276, 7
          %v1278 = vsub.s32 %v1275, %v1277
          %v1279 = vrot.slane %v1271, %v1278
          %v1281 = vunpack.c.l.s4 1966171168
          %v1282 = vunpack.c.0.s8 %v1281
          %v1283 = vlaneseq
          %v1284 = vshrl.u32 %v1283, 7
          %v1285 = vsub.s32 %v1282, %v1284
          %v1286 = vrot.slane %v1272, %v1285
          %v1287 = vcombine.low %v1279, %v1286
          %v1289 = vmax.f32 %v1230, %v1287
          %1290 = vst [vmem:[%s324] sm:$0xff] %v1289
        $region64: #{tpu_custom_call.1} parent=47 // pred_fallthru
          _
        %s1291 = sand.u32 %s197, 1
        %s1292 = scalar_lea.sflag [#allocation4], %s1291
        %s1293 = sand.u32 %s197, 1
        %s1294 = smul.addr %s1293, 8
        %s1295 = scalar_lea.vmem [#allocation7], %s1294
        // Predicated region
        $region65: #{tpu_custom_call.1} parent=47 // pred_check
          %p1296 = pneg %p207
        $region66: #{tpu_custom_call.1} parent=47 // pred_check_branch
          %1298 = sbr.rel (%p1296) target = $region68
        $region67: #{tpu_custom_call.1} parent=47 // pred_region
          %s1300 = ssub.s32 128, 128
          %1301 = vsyncadd %s1292, %s1300
          %s1302 = smul.addr %s27, 8
          %s1303 = smul.addr %s1302, 16
          %s1304 = scalar_lea.hbm %s7, %s1303
          %s1306 = sshll.u32 %s1295, 4
          %s1307 = int_to_ptr.vmem [resolvable:$true] %s1306
          %1309 = dma.vmem_to_hbm [thread:$0]  %s1307, 128, %s1304, %s1292
        $region68: #{tpu_custom_call.1} parent=47 // pred_fallthru
          _
      $region48: #{tpu_custom_call.1} parent=5 // pred_fallthru
        _
      %p1310 = scmp.le.s32.totalorder 2, %s18
      // Predicated region
      $region69: #{tpu_custom_call.1} parent=5 // pred_check
        %p1311 = pneg %p1310
      $region70: #{tpu_custom_call.1} parent=5 // pred_check_branch
        %1313 = sbr.rel (%p1311) target = $region72
      $region71: #{tpu_custom_call.1} parent=5 // pred_region
        %s1314 = ssub.s32 %s18, 2
        // Predicated region
        $region73: #{tpu_custom_call.1} parent=71 // pred_check
          %p1315 = pneg %p213
        $region74: #{tpu_custom_call.1} parent=71 // pred_check_branch
          %1317 = sbr.rel (%p1315) target = $region76
        $region75: #{tpu_custom_call.1} parent=71 // pred_region
          %s1318 = sand.u32 %s198, 1
          %s1319 = scalar_lea.sflag [#allocation4], %s1318
          %s1320 = sand.u32 %s198, 1
          %s1321 = smul.addr %s1320, 8
          %s1322 = scalar_lea.vmem [#allocation7], %s1321
          %1323 = dma.done %s1319, 128
        $region76: #{tpu_custom_call.1} parent=71 // pred_fallthru
          _
      $region72: #{tpu_custom_call.1} parent=5 // pred_fallthru
        _
    $region6: #{tpu_custom_call.1} parent=1 // loop_footer
      %s22 = sadd.s32 1, %s18
    $region7: #{tpu_custom_call.1} parent=1 // loop_footer_branch
      %17 = sbr.rel target = $region3
    $region8: #{tpu_custom_call.1} parent=1 // loop_exit
      _
    %1324 = vsyncpa [#allocation3], 1
    %s1325 = scalar_lea.sflag [#allocation3], 1
    %1326 = vsyncpa %s1325, 1
    %1327 = vsyncpa [#allocation6], 1
    %1328 = vsyncpa [#allocation4], 1
    %s1329 = scalar_lea.sflag [#allocation4], 1
    %1330 = vsyncpa %s1329, 1

</llo_original>
